<compile_context>
chip_gen: v5e
topology: v5e:2x2
jax: 0.10.0
libtpu: 0.0.40
codegen_flags: <defaults>
</compile_context>

<pallas_src>
import functools

import jax
import jax.numpy as jnp
from jax.experimental import pallas as pl
from jax.experimental.pallas import tpu as pltpu


def _round_up(v, m):
    return (v + m - 1) // m * m


def _vmem_capacity_bytes():
    cap = 128 * 1024 * 1024
    try:
        cap = int(getattr(pltpu.get_tpu_info(), "vmem_capacity_bytes", cap))
    except Exception:
        pass
    return cap


def _vmem_limit_bytes():
    # 3/4 of physical per-TC VMEM (48 MiB on v7x, 96 MiB on v5e/v6e), capped.
    cap = _vmem_capacity_bytes()
    return max(32 * 1024 * 1024, min(cap * 3 // 4, 112 * 1024 * 1024))


def _default_block_m():
    # Bigger token tiles amortise per-grid-step overhead on 128-MiB parts.
    return 512 if _vmem_capacity_bytes() >= 128 * 1024 * 1024 else 256


def _ffn_kernel(x_ref, w1_ref, b1_ref, w2_ref, b2_ref, o_ref, acc_ref, *,
                compute_dtype):
    # x_ref  : (tm, Cp)        input token tile (f32 or bf16; cast below)
    # w1_ref : (Cp, tH)        bf16 W1 slice
    # b1_ref : (1, tH)         f32 b1 slice
    # w2_ref : (tH, Cp)        bf16 W2 slice
    # b2_ref : (1, Cp)         f32 b2
    # o_ref  : (tm, Cp)        output tile
    # acc_ref: (tm, Cp) f32    accumulator, carried across the H grid axis
    h_idx = pl.program_id(1)

    @pl.when(h_idx == 0)
    def _init():
        acc_ref[...] = jnp.zeros_like(acc_ref)

    # First GEMM on the MXU (f32 accumulation); bias + ReLU on the VPU.
    x = x_ref[...].astype(compute_dtype)
    h = jnp.dot(x, w1_ref[...], preferred_element_type=jnp.float32)
    h = jnp.maximum(h + b1_ref[...], 0.0)
    # Second GEMM: accumulate this H chunk's contribution directly; the
    # activation never round-trips through a (tm, H) VMEM scratch.
    acc_ref[...] += jnp.dot(h.astype(compute_dtype), w2_ref[...],
                            preferred_element_type=jnp.float32)

    @pl.when(h_idx == pl.num_programs(1) - 1)
    def _finalize():
        o_ref[...] = (acc_ref[...] + b2_ref[...]).astype(o_ref.dtype)


def prepare_ffn_params(w1, b1, w2, b2, *, compute_dtype=jnp.bfloat16,
                       block_h=None,
                       resident_weight_budget=24 * 1024 * 1024):
    """Pad / cast the Linear weights ONCE (hoisted out of the per-call path).

    w1: (C, H), b1: (H,), w2: (H, C), b2: (C,) with H = 4*C for this module.
    Returns a params dict consumed by feed_forward_projection().
    """
    C, H = w1.shape
    itemsize = jnp.dtype(compute_dtype).itemsize
    C_pad = _round_up(C, 128)
    if block_h is None:
        H128 = _round_up(H, 128)
        if 2 * C_pad * H128 * itemsize <= resident_weight_budget:
            block_h = H128                       # fully resident, one H chunk
        else:
            # Stream ~8 MiB (double-buffered) of weight slices per H chunk.
            target = 8 * 1024 * 1024
            block_h = max(128, min(H128, (target // (4 * C_pad * itemsize))
                                   // 128 * 128))
    block_h = _round_up(block_h, 128)
    H_pad = _round_up(H, block_h)

    w1p = jnp.pad(w1.astype(compute_dtype), ((0, C_pad - C), (0, H_pad - H)))
    w2p = jnp.pad(w2.astype(compute_dtype), ((0, H_pad - H), (0, C_pad - C)))
    b1p = jnp.pad(b1.astype(jnp.float32), (0, H_pad - H)).reshape(1, H_pad)
    b2p = jnp.pad(b2.astype(jnp.float32), (0, C_pad - C)).reshape(1, C_pad)
    return dict(w1=w1p, b1=b1p, w2=w2p, b2=b2p, block_h=block_h,
                compute_dtype=compute_dtype)


@functools.partial(
    jax.jit,
    static_argnames=("block_m", "block_h", "compute_dtype", "out_dtype",
                     "single_buffer_resident"))
def _ffn_forward(x, w1p, b1p, w2p, b2p, *, block_m, block_h, compute_dtype,
                 out_dtype, single_buffer_resident):
    B, T, C = x.shape
    M = B * T
    C_pad, H_pad = w1p.shape
    out_dtype = x.dtype if out_dtype is None else out_dtype

    # Tail-minimising, 16-row (bf16 sublane packing) aligned token tile.
    num_m = max(1, pl.cdiv(M, block_m))
    block_m_eff = _round_up(pl.cdiv(M, num_m), 16)
    M_pad = num_m * block_m_eff

    x2d = x.reshape(M, C)
    if M_pad != M or C_pad != C:
        # A padding copy is unavoidable here -> also cast it to the compute
        # dtype so the kernel reads half the bytes.
        x2d = jnp.pad(x2d.astype(compute_dtype),
                      ((0, M_pad - M), (0, C_pad - C)))
    # else: pass x through untouched (f32) and cast inside the kernel.

    grid_h = H_pad // block_h
    resident = grid_h == 1
    # Constant-index operands never re-DMA; single-buffer them to halve the
    # resident-weight VMEM (only meaningful when the whole H fits one chunk).
    w_mode = pl.Buffered(1) if (resident and single_buffer_resident) else None

    def spec(shape, index_map, mode=None):
        if mode is None:
            return pl.BlockSpec(shape, index_map)
        return pl.BlockSpec(shape, index_map, pipeline_mode=mode)

    itemsize = jnp.dtype(compute_dtype).itemsize
    w_bytes = 2 * C_pad * H_pad * itemsize
    cost = pl.CostEstimate(
        flops=4 * M_pad * C_pad * H_pad,           # two GEMMs, 2*M*C*H each
        transcendentals=0,
        bytes_accessed=int(M_pad * C_pad * x2d.dtype.itemsize
                           + (w_bytes if resident else w_bytes * num_m)
                           + (H_pad + C_pad) * 4
                           + M_pad * C_pad * jnp.dtype(out_dtype).itemsize),
    )

    kernel = functools.partial(_ffn_kernel, compute_dtype=compute_dtype)

    out2d = pl.pallas_call(
        kernel,
        out_shape=jax.ShapeDtypeStruct((M_pad, C_pad), out_dtype),
        grid_spec=pltpu.PrefetchScalarGridSpec(
            num_scalar_prefetch=0,
            grid=(num_m, grid_h),                       # reduction axis last
            in_specs=[
                spec((block_m_eff, C_pad), lambda i, h: (i, 0)),   # x tile
                spec((C_pad, block_h), lambda i, h: (0, h), w_mode),  # W1
                spec((1, block_h), lambda i, h: (0, h), w_mode),      # b1
                spec((block_h, C_pad), lambda i, h: (h, 0), w_mode),  # W2
                spec((1, C_pad), lambda i, h: (0, 0), w_mode),        # b2
            ],
            out_specs=pl.BlockSpec((block_m_eff, C_pad), lambda i, h: (i, 0)),
            scratch_shapes=[pltpu.VMEM((block_m_eff, C_pad), jnp.float32)],
        ),
        compiler_params=pltpu.CompilerParams(
            dimension_semantics=("parallel", "arbitrary"),
            vmem_limit_bytes=_vmem_limit_bytes(),
        ),
        cost_estimate=cost,
    )(x2d, w1p, b1p, w2p, b2p)

    return out2d[:M, :C].reshape(B, T, C)


def feed_forward_projection(x, params, *, block_m=None, out_dtype=None):
    """x: (B, T, C); params: output of prepare_ffn_params()."""
    if block_m is None:
        block_m = _default_block_m()
    args = (x, params["w1"], params["b1"], params["w2"], params["b2"])
    kwargs = dict(block_m=block_m, block_h=params["block_h"],
                  compute_dtype=params["compute_dtype"], out_dtype=out_dtype)
    try:
        return _ffn_forward(*args, single_buffer_resident=True, **kwargs)
    except Exception:
        # Fallback for environments where BlockSpec(pipeline_mode=Buffered(1))
        # is not accepted; semantics are identical, only VMEM use differs.
        return _ffn_forward(*args, single_buffer_resident=False, **kwargs)


def _reference(x, w1, b1, w2, b2):
    h = jnp.maximum(x @ w1 + b1, 0.0)
    return h @ w2 + b2


if __name__ == "__main__":
    # cfg.n_embed = 32; hidden = 4 * n_embed = 128
    B, T, C = 2, 8, 32
    H = 4 * C

    key = jax.random.PRNGKey(0)
    kx, k1, k2, k3, k4 = jax.random.split(key, 5)

    x = jax.random.normal(kx, (B, T, C), dtype=jnp.float32)

    # Deterministic init mirroring nn.Linear's uniform(-1/sqrt(fan_in), ...).
    lim1 = 1.0 / jnp.sqrt(jnp.float32(C))
    lim2 = 1.0 / jnp.sqrt(jnp.float32(H))
    w1 = jax.random.uniform(k1, (C, H), jnp.float32, -lim1, lim1)
    b1 = jax.random.uniform(k2, (H,), jnp.float32, -lim1, lim1)
    w2 = jax.random.uniform(k3, (H, C), jnp.float32, -lim2, lim2)
    b2 = jax.random.uniform(k4, (C,), jnp.float32, -lim2, lim2)

    # Weights padded / cast ONCE (hoisted out of the per-call path).
    params = prepare_ffn_params(w1, b1, w2, b2)

    out = jax.block_until_ready(feed_forward_projection(x, params))
    ref = _reference(x, w1, b1, w2, b2)
    assert out.shape == (B, T, C)
    err = float(jnp.max(jnp.abs(out - ref)))
    # bf16 MXU inputs with f32 accumulation -> ~1e-2 worst-case abs error here.
    assert err < 5e-2, f"mismatch vs reference (max abs err {err})"

    # Odd token count exercises the M-padding / tail-minimising path.
    x_odd = jax.random.normal(kx, (1, 5, C), dtype=jnp.float32)
    out_odd = jax.block_until_ready(feed_forward_projection(x_odd, params))
    err_odd = float(jnp.max(jnp.abs(out_odd - _reference(x_odd, w1, b1, w2, b2))))
    assert out_odd.shape == (1, 5, C)
    assert err_odd < 5e-2, f"odd-M mismatch (max abs err {err_odd})"

    # Force the H-streaming / accumulation path (grid_h > 1) at small shape.
    C2, H2 = 64, 256
    k5, k6, k7, k8, k9 = jax.random.split(jax.random.PRNGKey(1), 5)
    x2 = jax.random.normal(k5, (B, T, C2), dtype=jnp.float32)
    l1 = 1.0 / jnp.sqrt(jnp.float32(C2))
    l2 = 1.0 / jnp.sqrt(jnp.float32(H2))
    w1b = jax.random.uniform(k6, (C2, H2), jnp.float32, -l1, l1)
    b1b = jax.random.uniform(k7, (H2,), jnp.float32, -l1, l1)
    w2b = jax.random.uniform(k8, (H2, C2), jnp.float32, -l2, l2)
    b2b = jax.random.uniform(k9, (C2,), jnp.float32, -l2, l2)
    params2 = prepare_ffn_params(w1b, b1b, w2b, b2b, block_h=128)
    out2 = jax.block_until_ready(feed_forward_projection(x2, params2))
    err2 = float(jnp.max(jnp.abs(out2 - _reference(x2, w1b, b1b, w2b, b2b))))
    assert out2.shape == (B, T, C2)
    assert err2 < 5e-2, f"streamed-H mismatch (max abs err {err2})"

    # Exercise the no-pad path (C % 128 == 0): x stays f32, cast in-kernel.
    C3, H3 = 128, 512
    ka, kb, kc, kd, ke = jax.random.split(jax.random.PRNGKey(2), 5)
    x3 = jax.random.normal(ka, (B, T, C3), dtype=jnp.float32)
    m1 = 1.0 / jnp.sqrt(jnp.float32(C3))
    m2 = 1.0 / jnp.sqrt(jnp.float32(H3))
    w1c = jax.random.uniform(kb, (C3, H3), jnp.float32, -m1, m1)
    b1c = jax.random.uniform(kc, (H3,), jnp.float32, -m1, m1)
    w2c = jax.random.uniform(kd, (H3, C3), jnp.float32, -m2, m2)
    b2c = jax.random.uniform(ke, (C3,), jnp.float32, -m2, m2)
    params3 = prepare_ffn_params(w1c, b1c, w2c, b2c)
    out3 = jax.block_until_ready(feed_forward_projection(x3, params3))
    err3 = float(jnp.max(jnp.abs(out3 - _reference(x3, w1c, b1c, w2c, b2c))))
    assert out3.shape == (B, T, C3)
    assert err3 < 5e-2, f"no-pad mismatch (max abs err {err3})"

    print("KERNEL_OK")
</pallas_src>

<mosaic_0001>
module attributes {stable_mosaic.version = 11 : i64} {
  func.func @_ffn_kernel(%arg0: i32, %arg1: i32, %arg2: memref<16x128xbf16, #tpu.memory_space<vmem>>, %arg3: memref<128x128xbf16, #tpu.memory_space<vmem>>, %arg4: memref<1x128xf32, #tpu.memory_space<vmem>>, %arg5: memref<128x128xbf16, #tpu.memory_space<vmem>>, %arg6: memref<1x128xf32, #tpu.memory_space<vmem>>, %arg7: memref<16x128xf32, #tpu.memory_space<vmem>>, %arg8: memref<16x128xf32, #tpu.memory_space<vmem>>) attributes {dimension_semantics = [#tpu.dimension_semantics<parallel>, #tpu.dimension_semantics<arbitrary>], iteration_bounds = array<i64: 1, 1>, scalar_prefetch = 0 : i64, scratch_operands = 1 : i64, tpu.core_type = #tpu.core_type<tc>, window_params = [{transform_indices = @transform_0, window_bounds = array<i64: 16, 128>}, {pipeline_mode = #tpu.pipeline_mode<synchronous>, transform_indices = @transform_1, window_bounds = array<i64: 128, 128>}, {pipeline_mode = #tpu.pipeline_mode<synchronous>, transform_indices = @transform_2, window_bounds = array<i64: 1, 128>}, {pipeline_mode = #tpu.pipeline_mode<synchronous>, transform_indices = @transform_3, window_bounds = array<i64: 128, 128>}, {pipeline_mode = #tpu.pipeline_mode<synchronous>, transform_indices = @transform_4, window_bounds = array<i64: 1, 128>}, {transform_indices = @transform_5, window_bounds = array<i64: 16, 128>}]} {
    %c0_i32 = arith.constant 0 : i32
    %0 = arith.cmpi eq, %arg1, %c0_i32 : i32
    %1 = arith.extui %0 : i1 to i32
    %c0_i32_0 = arith.constant 0 : i32
    %2 = arith.cmpi ne, %1, %c0_i32_0 : i32
    scf.if %2 {
      %cst_16 = arith.constant 0.000000e+00 : f32
      %20 = vector.broadcast %cst_16 : f32 to vector<16x128xf32>
      %c0_17 = arith.constant 0 : index
      %c0_18 = arith.constant 0 : index
      %21 = vector.load %arg8[%c0_17, %c0_18] : memref<16x128xf32, #tpu.memory_space<vmem>>, vector<16x128xf32>
      tpu.vector_store %arg8[%c0_17, %c0_18], %20 {strides = array<i32>} : memref<16x128xf32, #tpu.memory_space<vmem>>, vector<16x128xf32>,
    } else {
    }
    %c0 = arith.constant 0 : index
    %c0_1 = arith.constant 0 : index
    %3 = vector.load %arg2[%c0, %c0_1] : memref<16x128xbf16, #tpu.memory_space<vmem>>, vector<16x128xbf16>
    %c0_2 = arith.constant 0 : index
    %c0_3 = arith.constant 0 : index
    %4 = vector.load %arg3[%c0_2, %c0_3] : memref<128x128xbf16, #tpu.memory_space<vmem>>, vector<128x128xbf16>
    %cst = arith.constant dense<0.000000e+00> : vector<16x128xf32>
    %5 = tpu.matmul %3, %4, %cst {dimension_numbers = #tpu.dot_dimension_numbers<[1], [0], [0], [1], [0, 0, 1, 1], [], []>} : vector<16x128xbf16>, vector<128x128xbf16>, vector<16x128xf32> -> vector<16x128xf32>
    %c0_4 = arith.constant 0 : index
    %c0_5 = arith.constant 0 : index
    %6 = vector.load %arg4[%c0_4, %c0_5] : memref<1x128xf32, #tpu.memory_space<vmem>>, vector<1x128xf32>
    %7 = vector.broadcast %6 : vector<1x128xf32> to vector<16x128xf32>
    %8 = arith.addf %5, %7 : vector<16x128xf32>
    %cst_6 = arith.constant 0.000000e+00 : f32
    %9 = vector.broadcast %cst_6 : f32 to vector<16x128xf32>
    %10 = arith.maximumf %8, %9 : vector<16x128xf32>
    %c0_7 = arith.constant 0 : index
    %c0_8 = arith.constant 0 : index
    %11 = vector.load %arg8[%c0_7, %c0_8] : memref<16x128xf32, #tpu.memory_space<vmem>>, vector<16x128xf32>
    %12 = arith.truncf %10 : vector<16x128xf32> to vector<16x128xbf16>
    %c0_9 = arith.constant 0 : index
    %c0_10 = arith.constant 0 : index
    %13 = vector.load %arg5[%c0_9, %c0_10] : memref<128x128xbf16, #tpu.memory_space<vmem>>, vector<128x128xbf16>
    %cst_11 = arith.constant dense<0.000000e+00> : vector<16x128xf32>
    %14 = tpu.matmul %12, %13, %cst_11 {dimension_numbers = #tpu.dot_dimension_numbers<[1], [0], [0], [1], [0, 0, 1, 1], [], []>} : vector<16x128xbf16>, vector<128x128xbf16>, vector<16x128xf32> -> vector<16x128xf32>
    %15 = arith.addf %11, %14 : vector<16x128xf32>
    %c0_12 = arith.constant 0 : index
    %c0_13 = arith.constant 0 : index
    %16 = vector.load %arg8[%c0_12, %c0_13] : memref<16x128xf32, #tpu.memory_space<vmem>>, vector<16x128xf32>
    tpu.vector_store %arg8[%c0_12, %c0_13], %15 {strides = array<i32>} : memref<16x128xf32, #tpu.memory_space<vmem>>, vector<16x128xf32>,
    %c0_i32_14 = arith.constant 0 : i32
    %17 = arith.cmpi eq, %arg1, %c0_i32_14 : i32
    %18 = arith.extui %17 : i1 to i32
    %c0_i32_15 = arith.constant 0 : i32
    %19 = arith.cmpi ne, %18, %c0_i32_15 : i32
    scf.if %19 {
      %c0_16 = arith.constant 0 : index
      %c0_17 = arith.constant 0 : index
      %20 = vector.load %arg8[%c0_16, %c0_17] : memref<16x128xf32, #tpu.memory_space<vmem>>, vector<16x128xf32>
      %c0_18 = arith.constant 0 : index
      %c0_19 = arith.constant 0 : index
      %21 = vector.load %arg6[%c0_18, %c0_19] : memref<1x128xf32, #tpu.memory_space<vmem>>, vector<1x128xf32>
      %22 = vector.broadcast %21 : vector<1x128xf32> to vector<16x128xf32>
      %23 = arith.addf %20, %22 : vector<16x128xf32>
      %c0_20 = arith.constant 0 : index
      %c0_21 = arith.constant 0 : index
      %24 = vector.load %arg7[%c0_20, %c0_21] : memref<16x128xf32, #tpu.memory_space<vmem>>, vector<16x128xf32>
      tpu.vector_store %arg7[%c0_20, %c0_21], %23 {strides = array<i32>} : memref<16x128xf32, #tpu.memory_space<vmem>>, vector<16x128xf32>,
    } else {
    }
    return
  }
  func.func @transform_0(%arg0: i32, %arg1: i32) -> (i32, i32) {
    %c0_i32 = arith.constant 0 : i32
    %c0_i32_0 = arith.constant 0 : i32
    return %arg0, %c0_i32 : i32, i32
  }
  func.func @transform_1(%arg0: i32, %arg1: i32) -> (i32, i32) {
    %c0_i32 = arith.constant 0 : i32
    %c0_i32_0 = arith.constant 0 : i32
    return %c0_i32, %arg1 : i32, i32
  }
  func.func @transform_2(%arg0: i32, %arg1: i32) -> (i32, i32) {
    %c0_i32 = arith.constant 0 : i32
    %c0_i32_0 = arith.constant 0 : i32
    return %c0_i32, %arg1 : i32, i32
  }
  func.func @transform_3(%arg0: i32, %arg1: i32) -> (i32, i32) {
    %c0_i32 = arith.constant 0 : i32
    %c0_i32_0 = arith.constant 0 : i32
    return %arg1, %c0_i32 : i32, i32
  }
  func.func @transform_4(%arg0: i32, %arg1: i32) -> (i32, i32) {
    %c0_i32 = arith.constant 0 : i32
    %c0_i32_0 = arith.constant 0 : i32
    %c0_i32_1 = arith.constant 0 : i32
    return %c0_i32, %c0_i32_0 : i32, i32
  }
  func.func @transform_5(%arg0: i32, %arg1: i32) -> (i32, i32) {
    %c0_i32 = arith.constant 0 : i32
    %c0_i32_0 = arith.constant 0 : i32
    return %arg0, %c0_i32 : i32, i32
  }
}

module attributes {stable_mosaic.version = 11 : i64} {
  func.func @_ffn_kernel(%arg0: i32, %arg1: i32, %arg2: memref<16x128xbf16, #tpu.memory_space<vmem>>, %arg3: memref<128x128xbf16, #tpu.memory_space<vmem>>, %arg4: memref<1x128xf32, #tpu.memory_space<vmem>>, %arg5: memref<128x128xbf16, #tpu.memory_space<vmem>>, %arg6: memref<1x128xf32, #tpu.memory_space<vmem>>, %arg7: memref<16x128xf32, #tpu.memory_space<vmem>>, %arg8: memref<16x128xf32, #tpu.memory_space<vmem>>) attributes {dimension_semantics = [#tpu.dimension_semantics<parallel>, #tpu.dimension_semantics<arbitrary>], iteration_bounds = array<i64: 1, 1>, scalar_prefetch = 0 : i64, scratch_operands = 1 : i64, tpu.core_type = #tpu.core_type<tc>, window_params = [{transform_indices = @transform_0, window_bounds = array<i64: 16, 128>}, {transform_indices = @transform_1, window_bounds = array<i64: 128, 128>}, {transform_indices = @transform_2, window_bounds = array<i64: 1, 128>}, {transform_indices = @transform_3, window_bounds = array<i64: 128, 128>}, {pipeline_mode = #tpu.pipeline_mode<synchronous>, transform_indices = @transform_4, window_bounds = array<i64: 1, 128>}, {transform_indices = @transform_5, window_bounds = array<i64: 16, 128>}]} {
    %c0_i32 = arith.constant 0 : i32
    %0 = arith.cmpi eq, %arg1, %c0_i32 : i32
    %1 = arith.extui %0 : i1 to i32
    %c0_i32_0 = arith.constant 0 : i32
    %2 = arith.cmpi ne, %1, %c0_i32_0 : i32
    scf.if %2 {
      %cst_16 = arith.constant 0.000000e+00 : f32
      %20 = vector.broadcast %cst_16 : f32 to vector<16x128xf32>
      %c0_17 = arith.constant 0 : index
      %c0_18 = arith.constant 0 : index
      %21 = vector.load %arg8[%c0_17, %c0_18] : memref<16x128xf32, #tpu.memory_space<vmem>>, vector<16x128xf32>
      tpu.vector_store %arg8[%c0_17, %c0_18], %20 {strides = array<i32>} : memref<16x128xf32, #tpu.memory_space<vmem>>, vector<16x128xf32>,
    } else {
    }
    %c0 = arith.constant 0 : index
    %c0_1 = arith.constant 0 : index
    %3 = vector.load %arg2[%c0, %c0_1] : memref<16x128xbf16, #tpu.memory_space<vmem>>, vector<16x128xbf16>
    %c0_2 = arith.constant 0 : index
    %c0_3 = arith.constant 0 : index
    %4 = vector.load %arg3[%c0_2, %c0_3] : memref<128x128xbf16, #tpu.memory_space<vmem>>, vector<128x128xbf16>
    %cst = arith.constant dense<0.000000e+00> : vector<16x128xf32>
    %5 = tpu.matmul %3, %4, %cst {dimension_numbers = #tpu.dot_dimension_numbers<[1], [0], [0], [1], [0, 0, 1, 1], [], []>} : vector<16x128xbf16>, vector<128x128xbf16>, vector<16x128xf32> -> vector<16x128xf32>
    %c0_4 = arith.constant 0 : index
    %c0_5 = arith.constant 0 : index
    %6 = vector.load %arg4[%c0_4, %c0_5] : memref<1x128xf32, #tpu.memory_space<vmem>>, vector<1x128xf32>
    %7 = vector.broadcast %6 : vector<1x128xf32> to vector<16x128xf32>
    %8 = arith.addf %5, %7 : vector<16x128xf32>
    %cst_6 = arith.constant 0.000000e+00 : f32
    %9 = vector.broadcast %cst_6 : f32 to vector<16x128xf32>
    %10 = arith.maximumf %8, %9 : vector<16x128xf32>
    %c0_7 = arith.constant 0 : index
    %c0_8 = arith.constant 0 : index
    %11 = vector.load %arg8[%c0_7, %c0_8] : memref<16x128xf32, #tpu.memory_space<vmem>>, vector<16x128xf32>
    %12 = arith.truncf %10 : vector<16x128xf32> to vector<16x128xbf16>
    %c0_9 = arith.constant 0 : index
    %c0_10 = arith.constant 0 : index
    %13 = vector.load %arg5[%c0_9, %c0_10] : memref<128x128xbf16, #tpu.memory_space<vmem>>, vector<128x128xbf16>
    %cst_11 = arith.constant dense<0.000000e+00> : vector<16x128xf32>
    %14 = tpu.matmul %12, %13, %cst_11 {dimension_numbers = #tpu.dot_dimension_numbers<[1], [0], [0], [1], [0, 0, 1, 1], [], []>} : vector<16x128xbf16>, vector<128x128xbf16>, vector<16x128xf32> -> vector<16x128xf32>
    %15 = arith.addf %11, %14 : vector<16x128xf32>
    %c0_12 = arith.constant 0 : index
    %c0_13 = arith.constant 0 : index
    %16 = vector.load %arg8[%c0_12, %c0_13] : memref<16x128xf32, #tpu.memory_space<vmem>>, vector<16x128xf32>
    tpu.vector_store %arg8[%c0_12, %c0_13], %15 {strides = array<i32>} : memref<16x128xf32, #tpu.memory_space<vmem>>, vector<16x128xf32>,
    %c0_i32_14 = arith.constant 0 : i32
    %17 = arith.cmpi eq, %arg1, %c0_i32_14 : i32
    %18 = arith.extui %17 : i1 to i32
    %c0_i32_15 = arith.constant 0 : i32
    %19 = arith.cmpi ne, %18, %c0_i32_15 : i32
    scf.if %19 {
      %c0_16 = arith.constant 0 : index
      %c0_17 = arith.constant 0 : index
      %20 = vector.load %arg8[%c0_16, %c0_17] : memref<16x128xf32, #tpu.memory_space<vmem>>, vector<16x128xf32>
      %c0_18 = arith.constant 0 : index
      %c0_19 = arith.constant 0 : index
      %21 = vector.load %arg6[%c0_18, %c0_19] : memref<1x128xf32, #tpu.memory_space<vmem>>, vector<1x128xf32>
      %22 = vector.broadcast %21 : vector<1x128xf32> to vector<16x128xf32>
      %23 = arith.addf %20, %22 : vector<16x128xf32>
      %c0_20 = arith.constant 0 : index
      %c0_21 = arith.constant 0 : index
      %24 = vector.load %arg7[%c0_20, %c0_21] : memref<16x128xf32, #tpu.memory_space<vmem>>, vector<16x128xf32>
      tpu.vector_store %arg7[%c0_20, %c0_21], %23 {strides = array<i32>} : memref<16x128xf32, #tpu.memory_space<vmem>>, vector<16x128xf32>,
    } else {
    }
    return
  }
  func.func @transform_0(%arg0: i32, %arg1: i32) -> (i32, i32) {
    %c0_i32 = arith.constant 0 : i32
    %c0_i32_0 = arith.constant 0 : i32
    return %arg0, %c0_i32 : i32, i32
  }
  func.func @transform_1(%arg0: i32, %arg1: i32) -> (i32, i32) {
    %c0_i32 = arith.constant 0 : i32
    %c0_i32_0 = arith.constant 0 : i32
    return %c0_i32, %arg1 : i32, i32
  }
  func.func @transform_2(%arg0: i32, %arg1: i32) -> (i32, i32) {
    %c0_i32 = arith.constant 0 : i32
    %c0_i32_0 = arith.constant 0 : i32
    return %c0_i32, %arg1 : i32, i32
  }
  func.func @transform_3(%arg0: i32, %arg1: i32) -> (i32, i32) {
    %c0_i32 = arith.constant 0 : i32
    %c0_i32_0 = arith.constant 0 : i32
    return %arg1, %c0_i32 : i32, i32
  }
  func.func @transform_4(%arg0: i32, %arg1: i32) -> (i32, i32) {
    %c0_i32 = arith.constant 0 : i32
    %c0_i32_0 = arith.constant 0 : i32
    %c0_i32_1 = arith.constant 0 : i32
    return %c0_i32, %c0_i32_0 : i32, i32
  }
  func.func @transform_5(%arg0: i32, %arg1: i32) -> (i32, i32) {
    %c0_i32 = arith.constant 0 : i32
    %c0_i32_0 = arith.constant 0 : i32
    return %arg0, %c0_i32 : i32, i32
  }
}

</mosaic_0001>

<llo_original>
// kernel: _ffn_forward.1
$region0: #{_ffn_forward.1}
  #allocation0 [shape = 'u32[]', space=smem, size = 0x4, offset = 0x4, fixed_abs, tag = 'smem constant byte address 0x4 - core index']
  #allocation1 [shape = 'u32[72,128]{1,0:T(1,128)}', space=vmem, size = 0x9000, scoped, tag = 'internal scratch']
  #allocation2 [shape = 'f32[16,128]{1,0:T(8,128)}', space=vmem, size = 0x2000, scoped, tag = 'scratch operand']
  %s0 = inlined_call_operand.vmem [shape: bf16[16,128], index: 0, kind: input, shape index: {}]
  %s1 = inlined_call_operand.hbm [shape: bf16[128,128], index: 1, kind: input, shape index: {}]
  %s2 = inlined_call_operand.vmem [shape: f32[1,128], index: 2, kind: input, shape index: {}]
  %s3 = inlined_call_operand.hbm [shape: bf16[128,128], index: 3, kind: input, shape index: {}]
  %s4 = inlined_call_operand.vmem [shape: f32[1,128], index: 4, kind: input, shape index: {}]
  %s5 = inlined_call_operand.vmem [shape: f32[16,128], index: 5, kind: output, shape index: {}]
  %s6 = sld [smem:[#allocation0]]
  $region46: #{_ffn_forward.1} parent=0
    _
  %s8 = ssub.s32 1, %s6
  %s9 = scalar_select 0, %s8, %s6
  $region1: #{_ffn_forward.1} parent=0
    #allocation3 [shape = 'u8[32768]{0}', space=vmem, size = 0x8000, scoped, tag = 'input window, operand 1, single buffered']
    #allocation4 [shape = 's32[1]{0}', space=sflag, size = 0x4, scoped, tag = 'scoped memory for _ffn_forward.1']
    #allocation5 [shape = 'u8[32768]{0}', space=vmem, size = 0x8000, scoped, tag = 'input window, operand 3, single buffered']
    #allocation6 [shape = 's32[1]{0}', space=sflag, size = 0x4, scoped, tag = 'scoped memory for _ffn_forward.1']
    %10 = vsyncpa [#allocation4], 0
    %11 = vsyncpa [#allocation6], 0
    // Predicated region
    $region2: #{_ffn_forward.1} parent=1 // pred_check
      _
    $region3: #{_ffn_forward.1} parent=1 // pred_check_branch
      %13 = sbr.rel (0) target = $region5
    $region4: #{_ffn_forward.1} parent=1 // pred_region
      _
    $region5: #{_ffn_forward.1} parent=1 // pred_fallthru
      _
    // Predicated region
    $region6: #{_ffn_forward.1} parent=1 // pred_check
      _
    $region7: #{_ffn_forward.1} parent=1 // pred_check_branch
      %15 = sbr.rel (0) target = $region9
    $region8: #{_ffn_forward.1} parent=1 // pred_region
      %17 = vsyncadd [#allocation4], 0
      %s18 = sshll.u32 %s1, 4
      %s19 = int_to_ptr.hbm [resolvable:$true] %s18
      %s20 = sshll.u32 [#allocation3], 4
      %s21 = int_to_ptr.vmem [resolvable:$true] %s20
      %26 = dma.hbm_to_vmem [thread:$0]  %s19, 1024, %s21, [#allocation4], 64, 64, 4
    $region9: #{_ffn_forward.1} parent=1 // pred_fallthru
      _
    // Predicated region
    $region10: #{_ffn_forward.1} parent=1 // pred_check
      _
    $region11: #{_ffn_forward.1} parent=1 // pred_check_branch
      %28 = sbr.rel (0) target = $region13
    $region12: #{_ffn_forward.1} parent=1 // pred_region
      _
    $region13: #{_ffn_forward.1} parent=1 // pred_fallthru
      _
    // Predicated region
    $region14: #{_ffn_forward.1} parent=1 // pred_check
      _
    $region15: #{_ffn_forward.1} parent=1 // pred_check_branch
      %30 = sbr.rel (0) target = $region17
    $region16: #{_ffn_forward.1} parent=1 // pred_region
      %32 = vsyncadd [#allocation6], 0
      %s33 = sshll.u32 %s3, 4
      %s34 = int_to_ptr.hbm [resolvable:$true] %s33
      %s35 = sshll.u32 [#allocation5], 4
      %s36 = int_to_ptr.vmem [resolvable:$true] %s35
      %41 = dma.hbm_to_vmem [thread:$0]  %s34, 1024, %s36, [#allocation6], 64, 64, 4
    $region17: #{_ffn_forward.1} parent=1 // pred_fallthru
      _
    // Predicated region
    $region18: #{_ffn_forward.1} parent=1 // pred_check
      _
    $region19: #{_ffn_forward.1} parent=1 // pred_check_branch
      %43 = sbr.rel (0) target = $region21
    $region20: #{_ffn_forward.1} parent=1 // pred_region
      _
    $region21: #{_ffn_forward.1} parent=1 // pred_fallthru
      _
    // Predicated region
    $region22: #{_ffn_forward.1} parent=1 // pred_check
      _
    $region23: #{_ffn_forward.1} parent=1 // pred_check_branch
      %45 = sbr.rel (0) target = $region25
    $region24: #{_ffn_forward.1} parent=1 // pred_region
      %47 = dma.done [#allocation4], 1024
    $region25: #{_ffn_forward.1} parent=1 // pred_fallthru
      _
    // Predicated region
    $region26: #{_ffn_forward.1} parent=1 // pred_check
      _
    $region27: #{_ffn_forward.1} parent=1 // pred_check_branch
      %49 = sbr.rel (0) target = $region29
    $region28: #{_ffn_forward.1} parent=1 // pred_region
      %51 = dma.done [#allocation6], 1024
    $region29: #{_ffn_forward.1} parent=1 // pred_fallthru
      _
    %p52 = scmp.eq.s32.totalorder 0, 0
    // Predicated region
    $region30: #{_ffn_forward.1} parent=1 // pred_check
      %p53 = pneg %p52
    $region31: #{_ffn_forward.1} parent=1 // pred_check_branch
      %55 = sbr.rel (%p53) target = $region33
    $region32: #{_ffn_forward.1} parent=1 // pred_region
      %56 = vst [vmem:[#allocation2] sm:$0xff] 0.0
      %57 = vst [vmem:[#allocation2 + $0x8] sm:$0xff] 0.0
    $region33: #{_ffn_forward.1} parent=1 // pred_fallthru
      _
    %v58 = vld [vmem:[%s0] sm:$0xf]
    %v59 = vld [vmem:[%s0 + $0x4] sm:$0xf]
    %v60 = vld [vmem:[#allocation3] sm:$0xf]
    %v61 = vld [vmem:[#allocation3 + $0x4] sm:$0xf]
    %v62 = vld [vmem:[#allocation3 + $0x8] sm:$0xf]
    %v63 = vld [vmem:[#allocation3 + $0xc] sm:$0xf]
    %v64 = vld [vmem:[#allocation3 + $0x10] sm:$0xf]
    %v65 = vld [vmem:[#allocation3 + $0x14] sm:$0xf]
    %v66 = vld [vmem:[#allocation3 + $0x18] sm:$0xf]
    %v67 = vld [vmem:[#allocation3 + $0x1c] sm:$0xf]
    %v68 = vld [vmem:[#allocation3 + $0x20] sm:$0xf]
    %v69 = vld [vmem:[#allocation3 + $0x24] sm:$0xf]
    %v70 = vld [vmem:[#allocation3 + $0x28] sm:$0xf]
    %v71 = vld [vmem:[#allocation3 + $0x2c] sm:$0xf]
    %v72 = vld [vmem:[#allocation3 + $0x30] sm:$0xf]
    %v73 = vld [vmem:[#allocation3 + $0x34] sm:$0xf]
    %v74 = vld [vmem:[#allocation3 + $0x38] sm:$0xf]
    %v75 = vld [vmem:[#allocation3 + $0x3c] sm:$0xf]
    %v76 = vld [vmem:[%s2] sm:$0x1]
    %v78 = vperm.slane %v76, 0
    %v82 = vunpack.c.l.b16 %v58
    %v83 = vunpack.c.l.b16 %v59
    %v84 = vpack.c.b16 %v83, %v82
    %v102 = vunpack.c.l.b16 %v60
    %v103 = vunpack.c.l.b16 %v61
    %v104 = vunpack.c.l.b16 %v62
    %v105 = vunpack.c.l.b16 %v63
    %v106 = vunpack.c.l.b16 %v64
    %v107 = vunpack.c.l.b16 %v65
    %v108 = vunpack.c.l.b16 %v66
    %v109 = vunpack.c.l.b16 %v67
    %v110 = vunpack.c.l.b16 %v68
    %v111 = vunpack.c.l.b16 %v69
    %v112 = vunpack.c.l.b16 %v70
    %v113 = vunpack.c.l.b16 %v71
    %v114 = vunpack.c.l.b16 %v72
    %v115 = vunpack.c.l.b16 %v73
    %v116 = vunpack.c.l.b16 %v74
    %v117 = vunpack.c.l.b16 %v75
    %v118 = vpack.c.b16 %v103, %v102
    %v119 = vpack.c.b16 %v105, %v104
    %v120 = vpack.c.b16 %v107, %v106
    %v121 = vpack.c.b16 %v109, %v108
    %v122 = vpack.c.b16 %v111, %v110
    %v123 = vpack.c.b16 %v113, %v112
    %v124 = vpack.c.b16 %v115, %v114
    %v125 = vpack.c.b16 %v117, %v116
    %134 = vmatpush.bf16.msra.mxu0 %v125
    %135 = vmatpush.bf16.msra.mxu0 %v124
    %136 = vmatpush.bf16.msra.mxu0 %v123
    %137 = vmatpush.bf16.msra.mxu0 %v122
    %138 = vmatpush.bf16.msra.mxu0 %v121
    %139 = vmatpush.bf16.msra.mxu0 %v120
    %140 = vmatpush.bf16.msra.mxu0 %v119
    %141 = vmatpush.bf16.msra.mxu0 %v118
    %142 = vmatmul.bf16.gmra.mxu0 %v84
    %v143 = vpop.f32.mrf.mxu0
    %v144 = vadd.f32 %v78, %v143
    %v145 = vpop.f32.mrf.mxu0
    %v146 = vadd.f32 %v78, %v145
    %147 = vdwg.mxu0
    %v148 = vmax.f32 %v144, 0.0
    %v149 = vmax.f32 %v146, 0.0
    %v150 = vld [vmem:[#allocation2] sm:$0xff]
    %v151 = vld [vmem:[#allocation2 + $0x8] sm:$0xff]
    %v152 = vpack.c.bf16 %v149, %v148
    %v153 = vld [vmem:[#allocation5] sm:$0xf]
    %v154 = vld [vmem:[#allocation5 + $0x4] sm:$0xf]
    %v155 = vld [vmem:[#allocation5 + $0x8] sm:$0xf]
    %v156 = vld [vmem:[#allocation5 + $0xc] sm:$0xf]
    %v157 = vld [vmem:[#allocation5 + $0x10] sm:$0xf]
    %v158 = vld [vmem:[#allocation5 + $0x14] sm:$0xf]
    %v159 = vld [vmem:[#allocation5 + $0x18] sm:$0xf]
    %v160 = vld [vmem:[#allocation5 + $0x1c] sm:$0xf]
    %v161 = vld [vmem:[#allocation5 + $0x20] sm:$0xf]
    %v162 = vld [vmem:[#allocation5 + $0x24] sm:$0xf]
    %v163 = vld [vmem:[#allocation5 + $0x28] sm:$0xf]
    %v164 = vld [vmem:[#allocation5 + $0x2c] sm:$0xf]
    %v165 = vld [vmem:[#allocation5 + $0x30] sm:$0xf]
    %v166 = vld [vmem:[#allocation5 + $0x34] sm:$0xf]
    %v167 = vld [vmem:[#allocation5 + $0x38] sm:$0xf]
    %v168 = vld [vmem:[#allocation5 + $0x3c] sm:$0xf]
    %v185 = vunpack.c.l.b16 %v153
    %v186 = vunpack.c.l.b16 %v154
    %v187 = vunpack.c.l.b16 %v155
    %v188 = vunpack.c.l.b16 %v156
    %v189 = vunpack.c.l.b16 %v157
    %v190 = vunpack.c.l.b16 %v158
    %v191 = vunpack.c.l.b16 %v159
    %v192 = vunpack.c.l.b16 %v160
    %v193 = vunpack.c.l.b16 %v161
    %v194 = vunpack.c.l.b16 %v162
    %v195 = vunpack.c.l.b16 %v163
    %v196 = vunpack.c.l.b16 %v164
    %v197 = vunpack.c.l.b16 %v165
    %v198 = vunpack.c.l.b16 %v166
    %v199 = vunpack.c.l.b16 %v167
    %v200 = vunpack.c.l.b16 %v168
    %v201 = vpack.c.b16 %v186, %v185
    %v202 = vpack.c.b16 %v188, %v187
    %v203 = vpack.c.b16 %v190, %v189
    %v204 = vpack.c.b16 %v192, %v191
    %v205 = vpack.c.b16 %v194, %v193
    %v206 = vpack.c.b16 %v196, %v195
    %v207 = vpack.c.b16 %v198, %v197
    %v208 = vpack.c.b16 %v200, %v199
    %217 = vmatpush.bf16.msra.mxu0 %v208
    %218 = vmatpush.bf16.msra.mxu0 %v207
    %219 = vmatpush.bf16.msra.mxu0 %v206
    %220 = vmatpush.bf16.msra.mxu0 %v205
    %221 = vmatpush.bf16.msra.mxu0 %v204
    %222 = vmatpush.bf16.msra.mxu0 %v203
    %223 = vmatpush.bf16.msra.mxu0 %v202
    %224 = vmatpush.bf16.msra.mxu0 %v201
    %225 = vmatmul.bf16.gmra.mxu0 %v152
    %v226 = vpop.f32.mrf.mxu0
    %v227 = vadd.f32 0.0, %v226
    %v228 = vpop.f32.mrf.mxu0
    %v229 = vadd.f32 0.0, %v228
    %230 = vdwg.mxu0
    %v231 = vadd.f32 %v150, %v227
    %v232 = vadd.f32 %v151, %v229
    %233 = vst [vmem:[#allocation2] sm:$0xff] %v231
    %234 = vst [vmem:[#allocation2 + $0x8] sm:$0xff] %v232
    // Predicated region
    $region34: #{_ffn_forward.1} parent=1 // pred_check
      %p235 = pneg %p52
    $region35: #{_ffn_forward.1} parent=1 // pred_check_branch
      %237 = sbr.rel (%p235) target = $region37
    $region36: #{_ffn_forward.1} parent=1 // pred_region
      %v238 = vld [vmem:[#allocation2] sm:$0xff]
      %v239 = vld [vmem:[#allocation2 + $0x8] sm:$0xff]
      %v240 = vld [vmem:[%s4] sm:$0x1]
      %v242 = vperm.slane %v240, 0
      %v244 = vadd.f32 %v238, %v242
      %v245 = vadd.f32 %v239, %v242
      %246 = vst [vmem:[%s5] sm:$0xff] %v244
      %247 = vst [vmem:[%s5 + $0x8] sm:$0xff] %v245
    $region37: #{_ffn_forward.1} parent=1 // pred_fallthru
      _
    // Predicated region
    $region38: #{_ffn_forward.1} parent=1 // pred_check
      _
    $region39: #{_ffn_forward.1} parent=1 // pred_check_branch
      %249 = sbr.rel (0) target = $region41
    $region40: #{_ffn_forward.1} parent=1 // pred_region
      _
    $region41: #{_ffn_forward.1} parent=1 // pred_fallthru
      _
    // Predicated region
    $region42: #{_ffn_forward.1} parent=1 // pred_check
      _
    $region43: #{_ffn_forward.1} parent=1 // pred_check_branch
      %251 = sbr.rel (0) target = $region45
    $region44: #{_ffn_forward.1} parent=1 // pred_region
      _
    $region45: #{_ffn_forward.1} parent=1 // pred_fallthru
      _
    %252 = vsyncpa [#allocation4], 1
    %253 = vsyncpa [#allocation6], 1

// kernel: _ffn_forward.1
$region0: #{_ffn_forward.1}
  #allocation0 [shape = 'u32[]', space=smem, size = 0x4, offset = 0x4, fixed_abs, tag = 'smem constant byte address 0x4 - core index']
  #allocation1 [shape = 'u32[72,128]{1,0:T(1,128)}', space=vmem, size = 0x9000, scoped, tag = 'internal scratch']
  #allocation2 [shape = 'f32[16,128]{1,0:T(8,128)}', space=vmem, size = 0x2000, scoped, tag = 'scratch operand']
  %s0 = inlined_call_operand.vmem [shape: bf16[16,128], index: 0, kind: input, shape index: {}]
  %s1 = inlined_call_operand.hbm [shape: bf16[128,128], index: 1, kind: input, shape index: {}]
  %s2 = inlined_call_operand.vmem [shape: f32[1,128], index: 2, kind: input, shape index: {}]
  %s3 = inlined_call_operand.hbm [shape: bf16[128,128], index: 3, kind: input, shape index: {}]
  %s4 = inlined_call_operand.vmem [shape: f32[1,128], index: 4, kind: input, shape index: {}]
  %s5 = inlined_call_operand.vmem [shape: f32[16,128], index: 5, kind: output, shape index: {}]
  %s6 = sld [smem:[#allocation0]]
  $region46: #{_ffn_forward.1} parent=0
    _
  %s8 = ssub.s32 1, %s6
  %s9 = scalar_select 0, %s8, %s6
  $region1: #{_ffn_forward.1} parent=0
    #allocation3 [shape = 'u8[32768]{0}', space=vmem, size = 0x8000, scoped, tag = 'input window, operand 1, single buffered']
    #allocation4 [shape = 's32[1]{0}', space=sflag, size = 0x4, scoped, tag = 'scoped memory for _ffn_forward.1']
    #allocation5 [shape = 'u8[32768]{0}', space=vmem, size = 0x8000, scoped, tag = 'input window, operand 3, single buffered']
    #allocation6 [shape = 's32[1]{0}', space=sflag, size = 0x4, scoped, tag = 'scoped memory for _ffn_forward.1']
    %10 = vsyncpa [#allocation4], 0
    %11 = vsyncpa [#allocation6], 0
    // Predicated region
    $region2: #{_ffn_forward.1} parent=1 // pred_check
      _
    $region3: #{_ffn_forward.1} parent=1 // pred_check_branch
      %13 = sbr.rel (0) target = $region5
    $region4: #{_ffn_forward.1} parent=1 // pred_region
      _
    $region5: #{_ffn_forward.1} parent=1 // pred_fallthru
      _
    // Predicated region
    $region6: #{_ffn_forward.1} parent=1 // pred_check
      _
    $region7: #{_ffn_forward.1} parent=1 // pred_check_branch
      %15 = sbr.rel (0) target = $region9
    $region8: #{_ffn_forward.1} parent=1 // pred_region
      %17 = vsyncadd [#allocation4], 0
      %s18 = sshll.u32 %s1, 4
      %s19 = int_to_ptr.hbm [resolvable:$true] %s18
      %s20 = sshll.u32 [#allocation3], 4
      %s21 = int_to_ptr.vmem [resolvable:$true] %s20
      %26 = dma.hbm_to_vmem [thread:$0]  %s19, 1024, %s21, [#allocation4], 64, 64, 4
    $region9: #{_ffn_forward.1} parent=1 // pred_fallthru
      _
    // Predicated region
    $region10: #{_ffn_forward.1} parent=1 // pred_check
      _
    $region11: #{_ffn_forward.1} parent=1 // pred_check_branch
      %28 = sbr.rel (0) target = $region13
    $region12: #{_ffn_forward.1} parent=1 // pred_region
      _
    $region13: #{_ffn_forward.1} parent=1 // pred_fallthru
      _
    // Predicated region
    $region14: #{_ffn_forward.1} parent=1 // pred_check
      _
    $region15: #{_ffn_forward.1} parent=1 // pred_check_branch
      %30 = sbr.rel (0) target = $region17
    $region16: #{_ffn_forward.1} parent=1 // pred_region
      %32 = vsyncadd [#allocation6], 0
      %s33 = sshll.u32 %s3, 4
      %s34 = int_to_ptr.hbm [resolvable:$true] %s33
      %s35 = sshll.u32 [#allocation5], 4
      %s36 = int_to_ptr.vmem [resolvable:$true] %s35
      %41 = dma.hbm_to_vmem [thread:$0]  %s34, 1024, %s36, [#allocation6], 64, 64, 4
    $region17: #{_ffn_forward.1} parent=1 // pred_fallthru
      _
    // Predicated region
    $region18: #{_ffn_forward.1} parent=1 // pred_check
      _
    $region19: #{_ffn_forward.1} parent=1 // pred_check_branch
      %43 = sbr.rel (0) target = $region21
    $region20: #{_ffn_forward.1} parent=1 // pred_region
      _
    $region21: #{_ffn_forward.1} parent=1 // pred_fallthru
      _
    // Predicated region
    $region22: #{_ffn_forward.1} parent=1 // pred_check
      _
    $region23: #{_ffn_forward.1} parent=1 // pred_check_branch
      %45 = sbr.rel (0) target = $region25
    $region24: #{_ffn_forward.1} parent=1 // pred_region
      %47 = dma.done [#allocation4], 1024
    $region25: #{_ffn_forward.1} parent=1 // pred_fallthru
      _
    // Predicated region
    $region26: #{_ffn_forward.1} parent=1 // pred_check
      _
    $region27: #{_ffn_forward.1} parent=1 // pred_check_branch
      %49 = sbr.rel (0) target = $region29
    $region28: #{_ffn_forward.1} parent=1 // pred_region
      %51 = dma.done [#allocation6], 1024
    $region29: #{_ffn_forward.1} parent=1 // pred_fallthru
      _
    %p52 = scmp.eq.s32.totalorder 0, 0
    // Predicated region
    $region30: #{_ffn_forward.1} parent=1 // pred_check
      %p53 = pneg %p52
    $region31: #{_ffn_forward.1} parent=1 // pred_check_branch
      %55 = sbr.rel (%p53) target = $region33
    $region32: #{_ffn_forward.1} parent=1 // pred_region
      %56 = vst [vmem:[#allocation2] sm:$0xff] 0.0
      %57 = vst [vmem:[#allocation2 + $0x8] sm:$0xff] 0.0
    $region33: #{_ffn_forward.1} parent=1 // pred_fallthru
      _
    %v58 = vld [vmem:[%s0] sm:$0xf]
    %v59 = vld [vmem:[%s0 + $0x4] sm:$0xf]
    %v60 = vld [vmem:[#allocation3] sm:$0xf]
    %v61 = vld [vmem:[#allocation3 + $0x4] sm:$0xf]
    %v62 = vld [vmem:[#allocation3 + $0x8] sm:$0xf]
    %v63 = vld [vmem:[#allocation3 + $0xc] sm:$0xf]
    %v64 = vld [vmem:[#allocation3 + $0x10] sm:$0xf]
    %v65 = vld [vmem:[#allocation3 + $0x14] sm:$0xf]
    %v66 = vld [vmem:[#allocation3 + $0x18] sm:$0xf]
    %v67 = vld [vmem:[#allocation3 + $0x1c] sm:$0xf]
    %v68 = vld [vmem:[#allocation3 + $0x20] sm:$0xf]
    %v69 = vld [vmem:[#allocation3 + $0x24] sm:$0xf]
    %v70 = vld [vmem:[#allocation3 + $0x28] sm:$0xf]
    %v71 = vld [vmem:[#allocation3 + $0x2c] sm:$0xf]
    %v72 = vld [vmem:[#allocation3 + $0x30] sm:$0xf]
    %v73 = vld [vmem:[#allocation3 + $0x34] sm:$0xf]
    %v74 = vld [vmem:[#allocation3 + $0x38] sm:$0xf]
    %v75 = vld [vmem:[#allocation3 + $0x3c] sm:$0xf]
    %v76 = vld [vmem:[%s2] sm:$0x1]
    %v78 = vperm.slane %v76, 0
    %v82 = vunpack.c.l.b16 %v58
    %v83 = vunpack.c.l.b16 %v59
    %v84 = vpack.c.b16 %v83, %v82
    %v102 = vunpack.c.l.b16 %v60
    %v103 = vunpack.c.l.b16 %v61
    %v104 = vunpack.c.l.b16 %v62
    %v105 = vunpack.c.l.b16 %v63
    %v106 = vunpack.c.l.b16 %v64
    %v107 = vunpack.c.l.b16 %v65
    %v108 = vunpack.c.l.b16 %v66
    %v109 = vunpack.c.l.b16 %v67
    %v110 = vunpack.c.l.b16 %v68
    %v111 = vunpack.c.l.b16 %v69
    %v112 = vunpack.c.l.b16 %v70
    %v113 = vunpack.c.l.b16 %v71
    %v114 = vunpack.c.l.b16 %v72
    %v115 = vunpack.c.l.b16 %v73
    %v116 = vunpack.c.l.b16 %v74
    %v117 = vunpack.c.l.b16 %v75
    %v118 = vpack.c.b16 %v103, %v102
    %v119 = vpack.c.b16 %v105, %v104
    %v120 = vpack.c.b16 %v107, %v106
    %v121 = vpack.c.b16 %v109, %v108
    %v122 = vpack.c.b16 %v111, %v110
    %v123 = vpack.c.b16 %v113, %v112
    %v124 = vpack.c.b16 %v115, %v114
    %v125 = vpack.c.b16 %v117, %v116
    %134 = vmatpush.bf16.msra.mxu0 %v125
    %135 = vmatpush.bf16.msra.mxu0 %v124
    %136 = vmatpush.bf16.msra.mxu0 %v123
    %137 = vmatpush.bf16.msra.mxu0 %v122
    %138 = vmatpush.bf16.msra.mxu0 %v121
    %139 = vmatpush.bf16.msra.mxu0 %v120
    %140 = vmatpush.bf16.msra.mxu0 %v119
    %141 = vmatpush.bf16.msra.mxu0 %v118
    %142 = vmatmul.bf16.gmra.mxu0 %v84
    %v143 = vpop.f32.mrf.mxu0
    %v144 = vadd.f32 %v78, %v143
    %v145 = vpop.f32.mrf.mxu0
    %v146 = vadd.f32 %v78, %v145
    %147 = vdwg.mxu0
    %v148 = vmax.f32 %v144, 0.0
    %v149 = vmax.f32 %v146, 0.0
    %v150 = vld [vmem:[#allocation2] sm:$0xff]
    %v151 = vld [vmem:[#allocation2 + $0x8] sm:$0xff]
    %v152 = vpack.c.bf16 %v149, %v148
    %v153 = vld [vmem:[#allocation5] sm:$0xf]
    %v154 = vld [vmem:[#allocation5 + $0x4] sm:$0xf]
    %v155 = vld [vmem:[#allocation5 + $0x8] sm:$0xf]
    %v156 = vld [vmem:[#allocation5 + $0xc] sm:$0xf]
    %v157 = vld [vmem:[#allocation5 + $0x10] sm:$0xf]
    %v158 = vld [vmem:[#allocation5 + $0x14] sm:$0xf]
    %v159 = vld [vmem:[#allocation5 + $0x18] sm:$0xf]
    %v160 = vld [vmem:[#allocation5 + $0x1c] sm:$0xf]
    %v161 = vld [vmem:[#allocation5 + $0x20] sm:$0xf]
    %v162 = vld [vmem:[#allocation5 + $0x24] sm:$0xf]
    %v163 = vld [vmem:[#allocation5 + $0x28] sm:$0xf]
    %v164 = vld [vmem:[#allocation5 + $0x2c] sm:$0xf]
    %v165 = vld [vmem:[#allocation5 + $0x30] sm:$0xf]
    %v166 = vld [vmem:[#allocation5 + $0x34] sm:$0xf]
    %v167 = vld [vmem:[#allocation5 + $0x38] sm:$0xf]
    %v168 = vld [vmem:[#allocation5 + $0x3c] sm:$0xf]
    %v185 = vunpack.c.l.b16 %v153
    %v186 = vunpack.c.l.b16 %v154
    %v187 = vunpack.c.l.b16 %v155
    %v188 = vunpack.c.l.b16 %v156
    %v189 = vunpack.c.l.b16 %v157
    %v190 = vunpack.c.l.b16 %v158
    %v191 = vunpack.c.l.b16 %v159
    %v192 = vunpack.c.l.b16 %v160
    %v193 = vunpack.c.l.b16 %v161
    %v194 = vunpack.c.l.b16 %v162
    %v195 = vunpack.c.l.b16 %v163
    %v196 = vunpack.c.l.b16 %v164
    %v197 = vunpack.c.l.b16 %v165
    %v198 = vunpack.c.l.b16 %v166
    %v199 = vunpack.c.l.b16 %v167
    %v200 = vunpack.c.l.b16 %v168
    %v201 = vpack.c.b16 %v186, %v185
    %v202 = vpack.c.b16 %v188, %v187
    %v203 = vpack.c.b16 %v190, %v189
    %v204 = vpack.c.b16 %v192, %v191
    %v205 = vpack.c.b16 %v194, %v193
    %v206 = vpack.c.b16 %v196, %v195
    %v207 = vpack.c.b16 %v198, %v197
    %v208 = vpack.c.b16 %v200, %v199
    %217 = vmatpush.bf16.msra.mxu0 %v208
    %218 = vmatpush.bf16.msra.mxu0 %v207
    %219 = vmatpush.bf16.msra.mxu0 %v206
    %220 = vmatpush.bf16.msra.mxu0 %v205
    %221 = vmatpush.bf16.msra.mxu0 %v204
    %222 = vmatpush.bf16.msra.mxu0 %v203
    %223 = vmatpush.bf16.msra.mxu0 %v202
    %224 = vmatpush.bf16.msra.mxu0 %v201
    %225 = vmatmul.bf16.gmra.mxu0 %v152
    %v226 = vpop.f32.mrf.mxu0
    %v227 = vadd.f32 0.0, %v226
    %v228 = vpop.f32.mrf.mxu0
    %v229 = vadd.f32 0.0, %v228
    %230 = vdwg.mxu0
    %v231 = vadd.f32 %v150, %v227
    %v232 = vadd.f32 %v151, %v229
    %233 = vst [vmem:[#allocation2] sm:$0xff] %v231
    %234 = vst [vmem:[#allocation2 + $0x8] sm:$0xff] %v232
    // Predicated region
    $region34: #{_ffn_forward.1} parent=1 // pred_check
      %p235 = pneg %p52
    $region35: #{_ffn_forward.1} parent=1 // pred_check_branch
      %237 = sbr.rel (%p235) target = $region37
    $region36: #{_ffn_forward.1} parent=1 // pred_region
      %v238 = vld [vmem:[#allocation2] sm:$0xff]
      %v239 = vld [vmem:[#allocation2 + $0x8] sm:$0xff]
      %v240 = vld [vmem:[%s4] sm:$0x1]
      %v242 = vperm.slane %v240, 0
      %v244 = vadd.f32 %v238, %v242
      %v245 = vadd.f32 %v239, %v242
      %246 = vst [vmem:[%s5] sm:$0xff] %v244
      %247 = vst [vmem:[%s5 + $0x8] sm:$0xff] %v245
    $region37: #{_ffn_forward.1} parent=1 // pred_fallthru
      _
    // Predicated region
    $region38: #{_ffn_forward.1} parent=1 // pred_check
      _
    $region39: #{_ffn_forward.1} parent=1 // pred_check_branch
      %249 = sbr.rel (0) target = $region41
    $region40: #{_ffn_forward.1} parent=1 // pred_region
      _
    $region41: #{_ffn_forward.1} parent=1 // pred_fallthru
      _
    // Predicated region
    $region42: #{_ffn_forward.1} parent=1 // pred_check
      _
    $region43: #{_ffn_forward.1} parent=1 // pred_check_branch
      %251 = sbr.rel (0) target = $region45
    $region44: #{_ffn_forward.1} parent=1 // pred_region
      _
    $region45: #{_ffn_forward.1} parent=1 // pred_fallthru
      _
    %252 = vsyncpa [#allocation4], 1
    %253 = vsyncpa [#allocation6], 1

</llo_original>
